<compile_context>
chip_gen: v6e
topology: v6e:2x2x1
jax: 0.10.0
libtpu: 0.0.40
codegen_flags: <defaults>
</compile_context>

<pallas_src>
import functools

import jax
import jax.numpy as jnp
from jax.experimental import pallas as pl
from jax.experimental.pallas import tpu as pltpu


def _round_up(x, m):
    return (x + m - 1) // m * m


def _precompute_kernel(inp_ref, w_ref, a1_ref, a2_ref, wt_top_ref, wt_bot_ref,
                       wh1_ref, wh2_ref, u_ref, v_ref):
    """Per row-tile node projections (hoisted out of the attention row loop)."""
    inp = inp_ref[...]                                                   # [T, Fp] f32
    h = jnp.dot(inp, w_ref[...], preferred_element_type=jnp.float32)     # [T, Fp]
    wh1_ref[...] = jnp.sum(h * a1_ref[...], axis=1, keepdims=True)       # [T, 1]
    wh2_ref[...] = jnp.sum(h * a2_ref[...], axis=1, keepdims=True)       # [T, 1]
    # Fold wtrans into the attention matmuls:
    #   u = inp @ wtrans[:F]      (positive branch)
    #   v = -(inp @ wtrans[F:])   (negation of the negative-attention branch folded in)
    u_ref[...] = jnp.dot(inp, wt_top_ref[...],
                         preferred_element_type=jnp.float32).astype(u_ref.dtype)
    v_ref[...] = (-jnp.dot(inp, wt_bot_ref[...],
                           preferred_element_type=jnp.float32)).astype(v_ref.dtype)


def _gat_attention_kernel(wh1_ref, wh2_ref, adj_ref, u_ref, v_ref, out_ref, *, alpha):
    wh1 = wh1_ref[...]                 # [T, 1]   query-side scores (this row tile)
    wh2 = wh2_ref[...]                 # [1, Np]  key-side scores (all keys)
    adj = adj_ref[...]                 # [T, Np]  bf16 adjacency slab; only >0 is used

    e = wh1 + wh2                      # [T, Np]
    e = jnp.where(e > 0, e, alpha * e)  # LeakyReLU(alpha)

    mask = adj > 0
    neg_big = -1.0e12
    pos_logits = jnp.where(mask, e, neg_big)
    neg_logits = jnp.where(mask, -e, neg_big)

    def _softmax_rows(x):
        m = jnp.max(x, axis=1, keepdims=True)
        p = jnp.exp(x - m)
        return p * pl.reciprocal(jnp.sum(p, axis=1, keepdims=True), approx=True)

    att = _softmax_rows(pos_logits).astype(jnp.bfloat16)    # [T, Np]
    natt = _softmax_rows(neg_logits).astype(jnp.bfloat16)   # [T, Np]

    # new_h_prime = attention @ u + softmax(neg_logits) @ v   (wtrans already folded in)
    acc = jnp.dot(att, u_ref[...], preferred_element_type=jnp.float32)
    acc = acc + jnp.dot(natt, v_ref[...], preferred_element_type=jnp.float32)

    # concat=True -> ELU (min() guards exp() against inf on the discarded branch).
    out_ref[...] = jnp.where(acc > 0, acc, jnp.exp(jnp.minimum(acc, 0.0)) - 1.0)


def graph_attention_layer(inp, adj, W, a, wtrans, *, alpha=0.2, tile_n=128):
    """Pallas implementation of GraphAttentionLayer.forward (concat=True, eval mode)."""
    N, f_in = inp.shape
    f_out = W.shape[1]
    assert f_in == f_out, "reference module requires in_features == out_features"
    assert a.shape == (2 * f_out, 1)
    assert wtrans.shape == (2 * f_out, f_out)

    f32 = jnp.float32
    f_pad = _round_up(f_out, 128)            # lane-dense feature dim
    tile_n = min(tile_n, _round_up(N, 8))    # row tile, multiple of 8 sublanes
    n_pad = _round_up(N, tile_n)
    grid = (n_pad // tile_n,)

    # Zero-padded, layout-friendly operands (padding rows/cols contribute nothing).
    inp_p = jnp.zeros((n_pad, f_pad), f32).at[:N, :f_in].set(inp.astype(f32))
    adj_p = jnp.zeros((n_pad, n_pad), jnp.bfloat16).at[:N, :N].set(
        (adj > 0).astype(jnp.bfloat16))
    w_p = jnp.zeros((f_pad, f_pad), f32).at[:f_in, :f_out].set(W.astype(f32))
    a1_p = jnp.zeros((1, f_pad), f32).at[0, :f_out].set(a[:f_out, 0].astype(f32))
    a2_p = jnp.zeros((1, f_pad), f32).at[0, :f_out].set(a[f_out:, 0].astype(f32))
    wt_top = jnp.zeros((f_pad, f_pad), f32).at[:f_in, :f_out].set(wtrans[:f_out].astype(f32))
    wt_bot = jnp.zeros((f_pad, f_pad), f32).at[:f_in, :f_out].set(wtrans[f_out:].astype(f32))

    # Stage 1: per-node projections, tiled over node rows.
    wh1, wh2, u, v = pl.pallas_call(
        _precompute_kernel,
        grid=grid,
        in_specs=[
            pl.BlockSpec((tile_n, f_pad), lambda i: (i, 0)),   # inp rows
            pl.BlockSpec((f_pad, f_pad), lambda i: (0, 0)),    # W
            pl.BlockSpec((1, f_pad), lambda i: (0, 0)),        # a1
            pl.BlockSpec((1, f_pad), lambda i: (0, 0)),        # a2
            pl.BlockSpec((f_pad, f_pad), lambda i: (0, 0)),    # wtrans top half
            pl.BlockSpec((f_pad, f_pad), lambda i: (0, 0)),    # wtrans bottom half
        ],
        out_specs=[
            pl.BlockSpec((tile_n, 1), lambda i: (i, 0)),
            pl.BlockSpec((tile_n, 1), lambda i: (i, 0)),
            pl.BlockSpec((tile_n, f_pad), lambda i: (i, 0)),
            pl.BlockSpec((tile_n, f_pad), lambda i: (i, 0)),
        ],
        out_shape=[
            jax.ShapeDtypeStruct((n_pad, 1), f32),             # wh1
            jax.ShapeDtypeStruct((n_pad, 1), f32),             # wh2
            jax.ShapeDtypeStruct((n_pad, f_pad), jnp.bfloat16),  # u
            jax.ShapeDtypeStruct((n_pad, f_pad), jnp.bfloat16),  # v
        ],
        compiler_params=pltpu.CompilerParams(dimension_semantics=("parallel",)),
    )(inp_p, w_p, a1_p, a2_p, wt_top, wt_bot)

    wh2_row = wh2.reshape(1, n_pad)   # key-side scores as one lane-dense row

    # Stage 2: masked dual softmax + attention matmuls, tiled over query rows.
    kernel = functools.partial(_gat_attention_kernel, alpha=float(alpha))
    out_p = pl.pallas_call(
        kernel,
        grid=grid,
        in_specs=[
            pl.BlockSpec((tile_n, 1), lambda i: (i, 0)),       # wh1 row tile
            pl.BlockSpec((1, n_pad), lambda i: (0, 0)),        # wh2 row (all keys)
            pl.BlockSpec((tile_n, n_pad), lambda i: (i, 0)),   # adjacency row slab (bf16)
            pl.BlockSpec((n_pad, f_pad), lambda i: (0, 0)),    # u (all keys, bf16)
            pl.BlockSpec((n_pad, f_pad), lambda i: (0, 0)),    # v (all keys, bf16)
        ],
        out_specs=pl.BlockSpec((tile_n, f_pad), lambda i: (i, 0)),
        out_shape=jax.ShapeDtypeStruct((n_pad, f_pad), f32),
        compiler_params=pltpu.CompilerParams(
            dimension_semantics=("parallel",),
            vmem_limit_bytes=48 * 1024 * 1024,
        ),
    )(wh1, wh2_row, adj_p, u, v)

    return out_p[:N, :f_out]


def _xavier_uniform(key, shape, gain):
    fan_in, fan_out = shape[0], shape[1]
    bound = gain * (6.0 / (fan_in + fan_out)) ** 0.5
    return jax.random.uniform(key, shape, jnp.float32, minval=-bound, maxval=bound)


if __name__ == "__main__":
    # Small shapes: N=16 nodes, in_features = out_features = 32.
    N = 16
    F_IN = F_OUT = 32
    ALPHA = 0.2

    key = jax.random.PRNGKey(0)
    k_inp, k_adj, k_w, k_a, k_wt = jax.random.split(key, 5)

    inp = jax.random.normal(k_inp, (N, F_IN), dtype=jnp.float32)
    # Random sparse-ish adjacency with self-loops so every row has an edge.
    adj = (jax.random.uniform(k_adj, (N, N)) > 0.6).astype(jnp.float32)
    adj = jnp.maximum(adj, jnp.eye(N, dtype=jnp.float32))

    gain = 1.414
    W = _xavier_uniform(k_w, (F_IN, F_OUT), gain)
    a = _xavier_uniform(k_a, (2 * F_OUT, 1), gain)
    wtrans = _xavier_uniform(k_wt, (2 * F_OUT, F_OUT), gain)

    out = graph_attention_layer(inp, adj, W, a, wtrans, alpha=ALPHA, tile_n=8)
    out = jax.block_until_ready(out)

    # Pure-JAX f32 reference (same math as the PyTorch module in eval mode).
    h = inp @ W
    wh1 = h @ a[:F_OUT, :]
    wh2 = h @ a[F_OUT:, :]
    e = wh1 + wh2.T
    e = jnp.where(e > 0, e, ALPHA * e)
    big_neg = -1.0e12
    att = jax.nn.softmax(jnp.where(adj > 0, e, big_neg), axis=1)
    natt = -jax.nn.softmax(jnp.where(adj > 0, -e, big_neg), axis=1)
    ref = jnp.concatenate([att @ inp, natt @ inp], axis=1) @ wtrans
    ref = jnp.where(ref > 0, ref, jnp.exp(ref) - 1.0)

    assert out.shape == (N, F_OUT)
    max_err = float(jnp.max(jnp.abs(out - ref)))
    # Tolerance loosened for bf16 attention-prob / u,v matmul inputs.
    assert jnp.allclose(out, ref, atol=3e-2, rtol=3e-2), f"mismatch vs reference (max abs err {max_err})"
    print("KERNEL_OK")
</pallas_src>

<mosaic_0001>
module attributes {stable_mosaic.version = 11 : i64} {
  func.func @_precompute_kernel(%arg0: i32, %arg1: memref<8x128xf32, #tpu.memory_space<vmem>>, %arg2: memref<128x128xf32, #tpu.memory_space<vmem>>, %arg3: memref<1x128xf32, #tpu.memory_space<vmem>>, %arg4: memref<1x128xf32, #tpu.memory_space<vmem>>, %arg5: memref<128x128xf32, #tpu.memory_space<vmem>>, %arg6: memref<128x128xf32, #tpu.memory_space<vmem>>, %arg7: memref<8x1xf32, #tpu.memory_space<vmem>>, %arg8: memref<8x1xf32, #tpu.memory_space<vmem>>, %arg9: memref<8x128xbf16, #tpu.memory_space<vmem>>, %arg10: memref<8x128xbf16, #tpu.memory_space<vmem>>) attributes {dimension_semantics = [#tpu.dimension_semantics<parallel>], iteration_bounds = array<i64: 2>, scalar_prefetch = 0 : i64, scratch_operands = 0 : i64, tpu.core_type = #tpu.core_type<tc>, window_params = [{transform_indices = @transform_0, window_bounds = array<i64: 8, 128>}, {pipeline_mode = #tpu.pipeline_mode<synchronous>, transform_indices = @transform_1, window_bounds = array<i64: 128, 128>}, {pipeline_mode = #tpu.pipeline_mode<synchronous>, transform_indices = @transform_2, window_bounds = array<i64: 1, 128>}, {pipeline_mode = #tpu.pipeline_mode<synchronous>, transform_indices = @transform_3, window_bounds = array<i64: 1, 128>}, {pipeline_mode = #tpu.pipeline_mode<synchronous>, transform_indices = @transform_4, window_bounds = array<i64: 128, 128>}, {pipeline_mode = #tpu.pipeline_mode<synchronous>, transform_indices = @transform_5, window_bounds = array<i64: 128, 128>}, {transform_indices = @transform_6, window_bounds = array<i64: 8, 1>}, {transform_indices = @transform_7, window_bounds = array<i64: 8, 1>}, {transform_indices = @transform_8, window_bounds = array<i64: 8, 128>}, {transform_indices = @transform_9, window_bounds = array<i64: 8, 128>}]} {
    %c0 = arith.constant 0 : index
    %c0_0 = arith.constant 0 : index
    %0 = vector.load %arg1[%c0, %c0_0] : memref<8x128xf32, #tpu.memory_space<vmem>>, vector<8x128xf32>
    %c0_1 = arith.constant 0 : index
    %c0_2 = arith.constant 0 : index
    %1 = vector.load %arg2[%c0_1, %c0_2] : memref<128x128xf32, #tpu.memory_space<vmem>>, vector<128x128xf32>
    %cst = arith.constant dense<0.000000e+00> : vector<8x128xf32>
    %2 = tpu.matmul %0, %1, %cst {dimension_numbers = #tpu.dot_dimension_numbers<[1], [0], [0], [1], [0, 0, 1, 1], [], []>} : vector<8x128xf32>, vector<128x128xf32>, vector<8x128xf32> -> vector<8x128xf32>
    %c0_3 = arith.constant 0 : index
    %c0_4 = arith.constant 0 : index
    %3 = vector.load %arg3[%c0_3, %c0_4] : memref<1x128xf32, #tpu.memory_space<vmem>>, vector<1x128xf32>
    %4 = vector.broadcast %3 : vector<1x128xf32> to vector<8x128xf32>
    %5 = arith.mulf %2, %4 : vector<8x128xf32>
    %cst_5 = arith.constant dense<0.000000e+00> : vector<8xf32>
    %6 = vector.multi_reduction <add>, %5, %cst_5 [1] : vector<8x128xf32> to vector<8xf32>
    %7 = vector.shape_cast %6 : vector<8xf32> to vector<8x1xf32>
    %c0_6 = arith.constant 0 : index
    %c0_7 = arith.constant 0 : index
    %8 = vector.load %arg7[%c0_6, %c0_7] : memref<8x1xf32, #tpu.memory_space<vmem>>, vector<8x1xf32>
    tpu.vector_store %arg7[%c0_6, %c0_7], %7 {strides = array<i32>} : memref<8x1xf32, #tpu.memory_space<vmem>>, vector<8x1xf32>,
    %c0_8 = arith.constant 0 : index
    %c0_9 = arith.constant 0 : index
    %9 = vector.load %arg4[%c0_8, %c0_9] : memref<1x128xf32, #tpu.memory_space<vmem>>, vector<1x128xf32>
    %10 = vector.broadcast %9 : vector<1x128xf32> to vector<8x128xf32>
    %11 = arith.mulf %2, %10 : vector<8x128xf32>
    %cst_10 = arith.constant dense<0.000000e+00> : vector<8xf32>
    %12 = vector.multi_reduction <add>, %11, %cst_10 [1] : vector<8x128xf32> to vector<8xf32>
    %13 = vector.shape_cast %12 : vector<8xf32> to vector<8x1xf32>
    %c0_11 = arith.constant 0 : index
    %c0_12 = arith.constant 0 : index
    %14 = vector.load %arg8[%c0_11, %c0_12] : memref<8x1xf32, #tpu.memory_space<vmem>>, vector<8x1xf32>
    tpu.vector_store %arg8[%c0_11, %c0_12], %13 {strides = array<i32>} : memref<8x1xf32, #tpu.memory_space<vmem>>, vector<8x1xf32>,
    %c0_13 = arith.constant 0 : index
    %c0_14 = arith.constant 0 : index
    %15 = vector.load %arg5[%c0_13, %c0_14] : memref<128x128xf32, #tpu.memory_space<vmem>>, vector<128x128xf32>
    %cst_15 = arith.constant dense<0.000000e+00> : vector<8x128xf32>
    %16 = tpu.matmul %0, %15, %cst_15 {dimension_numbers = #tpu.dot_dimension_numbers<[1], [0], [0], [1], [0, 0, 1, 1], [], []>} : vector<8x128xf32>, vector<128x128xf32>, vector<8x128xf32> -> vector<8x128xf32>
    %17 = arith.truncf %16 : vector<8x128xf32> to vector<8x128xbf16>
    %c0_16 = arith.constant 0 : index
    %c0_17 = arith.constant 0 : index
    %18 = vector.load %arg9[%c0_16, %c0_17] : memref<8x128xbf16, #tpu.memory_space<vmem>>, vector<8x128xbf16>
    tpu.vector_store %arg9[%c0_16, %c0_17], %17 {strides = array<i32>} : memref<8x128xbf16, #tpu.memory_space<vmem>>, vector<8x128xbf16>,
    %c0_18 = arith.constant 0 : index
    %c0_19 = arith.constant 0 : index
    %19 = vector.load %arg6[%c0_18, %c0_19] : memref<128x128xf32, #tpu.memory_space<vmem>>, vector<128x128xf32>
    %cst_20 = arith.constant dense<0.000000e+00> : vector<8x128xf32>
    %20 = tpu.matmul %0, %19, %cst_20 {dimension_numbers = #tpu.dot_dimension_numbers<[1], [0], [0], [1], [0, 0, 1, 1], [], []>} : vector<8x128xf32>, vector<128x128xf32>, vector<8x128xf32> -> vector<8x128xf32>
    %cst_21 = arith.constant 0.000000e+00 : f32
    %21 = vector.broadcast %cst_21 : f32 to vector<8x128xf32>
    %22 = arith.subf %21, %20 : vector<8x128xf32>
    %23 = arith.truncf %22 : vector<8x128xf32> to vector<8x128xbf16>
    %c0_22 = arith.constant 0 : index
    %c0_23 = arith.constant 0 : index
    %24 = vector.load %arg10[%c0_22, %c0_23] : memref<8x128xbf16, #tpu.memory_space<vmem>>, vector<8x128xbf16>
    tpu.vector_store %arg10[%c0_22, %c0_23], %23 {strides = array<i32>} : memref<8x128xbf16, #tpu.memory_space<vmem>>, vector<8x128xbf16>,
    return
  }
  func.func @transform_0(%arg0: i32) -> (i32, i32) {
    %c0_i32 = arith.constant 0 : i32
    %c0_i32_0 = arith.constant 0 : i32
    return %arg0, %c0_i32 : i32, i32
  }
  func.func @transform_1(%arg0: i32) -> (i32, i32) {
    %c0_i32 = arith.constant 0 : i32
    %c0_i32_0 = arith.constant 0 : i32
    %c0_i32_1 = arith.constant 0 : i32
    return %c0_i32, %c0_i32_0 : i32, i32
  }
  func.func @transform_2(%arg0: i32) -> (i32, i32) {
    %c0_i32 = arith.constant 0 : i32
    %c0_i32_0 = arith.constant 0 : i32
    %c0_i32_1 = arith.constant 0 : i32
    return %c0_i32, %c0_i32_0 : i32, i32
  }
  func.func @transform_3(%arg0: i32) -> (i32, i32) {
    %c0_i32 = arith.constant 0 : i32
    %c0_i32_0 = arith.constant 0 : i32
    %c0_i32_1 = arith.constant 0 : i32
    return %c0_i32, %c0_i32_0 : i32, i32
  }
  func.func @transform_4(%arg0: i32) -> (i32, i32) {
    %c0_i32 = arith.constant 0 : i32
    %c0_i32_0 = arith.constant 0 : i32
    %c0_i32_1 = arith.constant 0 : i32
    return %c0_i32, %c0_i32_0 : i32, i32
  }
  func.func @transform_5(%arg0: i32) -> (i32, i32) {
    %c0_i32 = arith.constant 0 : i32
    %c0_i32_0 = arith.constant 0 : i32
    %c0_i32_1 = arith.constant 0 : i32
    return %c0_i32, %c0_i32_0 : i32, i32
  }
  func.func @transform_6(%arg0: i32) -> (i32, i32) {
    %c0_i32 = arith.constant 0 : i32
    %c0_i32_0 = arith.constant 0 : i32
    return %arg0, %c0_i32 : i32, i32
  }
  func.func @transform_7(%arg0: i32) -> (i32, i32) {
    %c0_i32 = arith.constant 0 : i32
    %c0_i32_0 = arith.constant 0 : i32
    return %arg0, %c0_i32 : i32, i32
  }
  func.func @transform_8(%arg0: i32) -> (i32, i32) {
    %c0_i32 = arith.constant 0 : i32
    %c0_i32_0 = arith.constant 0 : i32
    return %arg0, %c0_i32 : i32, i32
  }
  func.func @transform_9(%arg0: i32) -> (i32, i32) {
    %c0_i32 = arith.constant 0 : i32
    %c0_i32_0 = arith.constant 0 : i32
    return %arg0, %c0_i32 : i32, i32
  }
}

</mosaic_0001>

<llo_original>
// kernel: tpu_custom_call.1
$region0: #{tpu_custom_call.1}
  #allocation0 [shape = 'u32[]', space=smem, size = 0x4, offset = 0x4, fixed_abs, tag = 'smem constant byte address 0x4 - core index']
  #allocation1 [shape = 'u32[144,128]{1,0:T(1,128)}', space=vmem, size = 0x12000, scoped, tag = 'internal scratch']
  %s0 = inlined_call_operand.hbm [shape: f32[16,128], index: 0, kind: input, shape index: {}]
  %s1 = inlined_call_operand.hbm [shape: f32[128,128], index: 1, kind: input, shape index: {}]
  %s2 = inlined_call_operand.vmem [shape: f32[1,128], index: 2, kind: input, shape index: {}]
  %s3 = inlined_call_operand.vmem [shape: f32[1,128], index: 3, kind: input, shape index: {}]
  %s4 = inlined_call_operand.hbm [shape: f32[128,128], index: 4, kind: input, shape index: {}]
  %s5 = inlined_call_operand.hbm [shape: f32[128,128], index: 5, kind: input, shape index: {}]
  %s6 = inlined_call_operand.vmem [shape: f32[16,1], index: 6, kind: output, shape index: {0}]
  %s7 = inlined_call_operand.vmem [shape: f32[16,1], index: 7, kind: output, shape index: {1}]
  %s8 = inlined_call_operand.hbm [shape: bf16[16,128], index: 8, kind: output, shape index: {2}]
  %s9 = inlined_call_operand.hbm [shape: bf16[16,128], index: 9, kind: output, shape index: {3}]
  %10 = xla_tuple %s6, %s7, %s8, %s9
  %s11 = sld [smem:[#allocation0]]
  $region97: #{tpu_custom_call.1} parent=0
    _
  %s13 = ssub.s32 1, %s11
  %s14 = scalar_select 0, %s13, %s11
  $region1: #{tpu_custom_call.1} parent=0
    #allocation2 [shape = 'u8[8192]{0}', space=vmem, size = 0x2000, scoped, tag = 'input window, operand 0']
    #allocation3 [shape = 's32[2]{0}', space=sflag, size = 0x8, scoped, tag = 'scoped memory for tpu_custom_call.1']
    #allocation4 [shape = 's32[2]{0}', space=sflag, size = 0x8, scoped, tag = 'scoped memory for tpu_custom_call.1']
    #allocation5 [shape = 'u8[65536]{0}', space=vmem, size = 0x10000, scoped, tag = 'input window, operand 1, single buffered']
    #allocation6 [shape = 's32[1]{0}', space=sflag, size = 0x4, scoped, tag = 'scoped memory for tpu_custom_call.1']
    #allocation7 [shape = 'u8[65536]{0}', space=vmem, size = 0x10000, scoped, tag = 'input window, operand 4, single buffered']
    #allocation8 [shape = 'u8[65536]{0}', space=vmem, size = 0x10000, scoped, tag = 'input window, operand 5, single buffered']
    #allocation9 [shape = 's32[1]{0}', space=sflag, size = 0x4, scoped, tag = 'scoped memory for tpu_custom_call.1']
    #allocation10 [shape = 'u8[4096]{0}', space=vmem, size = 0x1000, scoped, tag = 'output window, operand 2']
    #allocation11 [shape = 'u8[4096]{0}', space=vmem, size = 0x1000, scoped, tag = 'output window, operand 3']
    #allocation12 [shape = 's32[2]{0}', space=sflag, size = 0x8, scoped, tag = 'scoped memory for tpu_custom_call.1']
    %15 = vsyncpa [#allocation3], 0
    %s16 = scalar_lea.sflag [#allocation3], 1
    %17 = vsyncpa %s16, 0
    %18 = vsyncpa [#allocation6], 0
    %19 = vsyncpa [#allocation9], 0
    %20 = vsyncpa [#allocation4], 0
    %s21 = scalar_lea.sflag [#allocation4], 1
    %22 = vsyncpa %s21, 0
    %23 = vsyncpa [#allocation12], 0
    %s24 = scalar_lea.sflag [#allocation12], 1
    %25 = vsyncpa %s24, 0
    loop: start=0, step=1, limit=4
    $region2: #{tpu_custom_call.1} parent=1 // loop_pre_header
      _
    $region3: #{tpu_custom_call.1} parent=1 // loop_header
      %s27 = sphi 0, %s31
      %p28 = scmp.ge.s32.totalorder %s27, 4
      %s37 = sphi 0, %s39
      %s40 = sphi 0, %s37
      %s41 = sphi 0, %s40
      %s57 = sphi 0, %s41
      %s61 = sphi 0, %s61
      %s63 = sphi 0, %s61
      %s64 = sphi 0, %s63
      %s78 = sphi 0, %s64
      %s82 = sphi 0, %s82
      %s84 = sphi 0, %s82
      %s85 = sphi 0, %s84
      %s99 = sphi 0, %s85
      %s103 = sphi 0, %s103
      %s105 = sphi 0, %s103
      %s106 = sphi 0, %s105
      %s120 = sphi 0, %s106
      %s124 = sphi 0, %s124
      %s126 = sphi 0, %s124
      %s127 = sphi 0, %s126
      %s141 = sphi 0, %s127
      %s145 = sphi 0, %s145
      %s147 = sphi 0, %s145
      %s148 = sphi 0, %s147
      %s162 = sphi 0, %s148
      %s168 = sphi 0, %s170
      %s171 = sphi 0, %s168
      %s172 = sphi 0, %s171
      %s188 = sphi 0, %s172
      %s194 = sphi 0, %s196
      %s197 = sphi 0, %s194
      %s198 = sphi 0, %s197
      %s214 = sphi 0, %s198
      %s220 = sphi 0, %s222
      %s223 = sphi 0, %s220
      %s224 = sphi 0, %s223
      %s240 = sphi 0, %s224
      %s246 = sphi 0, %s248
      %s249 = sphi 0, %s246
      %s250 = sphi 0, %s249
      %s266 = sphi 0, %s250
    $region4: #{tpu_custom_call.1} parent=1 // loop_header_branch
      %30 = sbr.rel (%p28) target = $region8
    $region5: #{tpu_custom_call.1} parent=1 // loop_body
      %s32 = ssub.s32 %s27, 1
      %s33 = ssub.s32 %s27, 2
      %s34 = sadd.s32 %s27, 1
      %s35 = ssub.s32 %s27, %s34
      %p36 = scmp.eq.s32.totalorder %s35, 0
      %s38 = sadd.s32 %s37, 1
      %s39 = scalar_select %p36, %s37, %s38
      %p42 = pneg %p36
      %p43 = scmp.eq.s32.totalorder %s27, 1
      %p44 = por %p42, %p43
      %p45 = scmp.ne.s32.totalorder %s37, %s40
      %p46 = scmp.eq.s32.totalorder %s27, 0
      %p47 = por %p45, %p46
      %p48 = scmp.ne.s32.totalorder %s37, %s40
      %p49 = scmp.eq.s32.totalorder %s32, 1
      %p50 = por %p48, %p49
      %p51 = scmp.ne.s32.totalorder %s40, %s41
      %p52 = scmp.eq.s32.totalorder %s32, 0
      %p53 = por %p51, %p52
      %p54 = scmp.ne.s32.totalorder %s40, %s41
      %p55 = scmp.eq.s32.totalorder %s33, 1
      %p56 = por %p54, %p55
      %p58 = scmp.ne.s32.totalorder %s41, %s57
      %p59 = scmp.eq.s32.totalorder %s33, 0
      %p60 = por %p58, %p59
      %s62 = sadd.s32 %s61, 1
      %p65 = scmp.eq.s32.totalorder %s27, 1
      %p66 = scmp.ne.s32.totalorder %s61, %s63
      %p67 = scmp.eq.s32.totalorder %s27, 0
      %p68 = por %p66, %p67
      %p69 = scmp.ne.s32.totalorder %s61, %s63
      %p70 = scmp.eq.s32.totalorder %s32, 1
      %p71 = por %p69, %p70
      %p72 = scmp.ne.s32.totalorder %s63, %s64
      %p73 = scmp.eq.s32.totalorder %s32, 0
      %p74 = por %p72, %p73
      %p75 = scmp.ne.s32.totalorder %s63, %s64
      %p76 = scmp.eq.s32.totalorder %s33, 1
      %p77 = por %p75, %p76
      %p79 = scmp.ne.s32.totalorder %s64, %s78
      %p80 = scmp.eq.s32.totalorder %s33, 0
      %p81 = por %p79, %p80
      %s83 = sadd.s32 %s82, 1
      %p86 = scmp.eq.s32.totalorder %s27, 1
      %p87 = scmp.ne.s32.totalorder %s82, %s84
      %p88 = scmp.eq.s32.totalorder %s27, 0
      %p89 = por %p87, %p88
      %p90 = scmp.ne.s32.totalorder %s82, %s84
      %p91 = scmp.eq.s32.totalorder %s32, 1
      %p92 = por %p90, %p91
      %p93 = scmp.ne.s32.totalorder %s84, %s85
      %p94 = scmp.eq.s32.totalorder %s32, 0
      %p95 = por %p93, %p94
      %p96 = scmp.ne.s32.totalorder %s84, %s85
      %p97 = scmp.eq.s32.totalorder %s33, 1
      %p98 = por %p96, %p97
      %p100 = scmp.ne.s32.totalorder %s85, %s99
      %p101 = scmp.eq.s32.totalorder %s33, 0
      %p102 = por %p100, %p101
      %s104 = sadd.s32 %s103, 1
      %p107 = scmp.eq.s32.totalorder %s27, 1
      %p108 = scmp.ne.s32.totalorder %s103, %s105
      %p109 = scmp.eq.s32.totalorder %s27, 0
      %p110 = por %p108, %p109
      %p111 = scmp.ne.s32.totalorder %s103, %s105
      %p112 = scmp.eq.s32.totalorder %s32, 1
      %p113 = por %p111, %p112
      %p114 = scmp.ne.s32.totalorder %s105, %s106
      %p115 = scmp.eq.s32.totalorder %s32, 0
      %p116 = por %p114, %p115
      %p117 = scmp.ne.s32.totalorder %s105, %s106
      %p118 = scmp.eq.s32.totalorder %s33, 1
      %p119 = por %p117, %p118
      %p121 = scmp.ne.s32.totalorder %s106, %s120
      %p122 = scmp.eq.s32.totalorder %s33, 0
      %p123 = por %p121, %p122
      %s125 = sadd.s32 %s124, 1
      %p128 = scmp.eq.s32.totalorder %s27, 1
      %p129 = scmp.ne.s32.totalorder %s124, %s126
      %p130 = scmp.eq.s32.totalorder %s27, 0
      %p131 = por %p129, %p130
      %p132 = scmp.ne.s32.totalorder %s124, %s126
      %p133 = scmp.eq.s32.totalorder %s32, 1
      %p134 = por %p132, %p133
      %p135 = scmp.ne.s32.totalorder %s126, %s127
      %p136 = scmp.eq.s32.totalorder %s32, 0
      %p137 = por %p135, %p136
      %p138 = scmp.ne.s32.totalorder %s126, %s127
      %p139 = scmp.eq.s32.totalorder %s33, 1
      %p140 = por %p138, %p139
      %p142 = scmp.ne.s32.totalorder %s127, %s141
      %p143 = scmp.eq.s32.totalorder %s33, 0
      %p144 = por %p142, %p143
      %s146 = sadd.s32 %s145, 1
      %p149 = scmp.eq.s32.totalorder %s27, 1
      %p150 = scmp.ne.s32.totalorder %s145, %s147
      %p151 = scmp.eq.s32.totalorder %s27, 0
      %p152 = por %p150, %p151
      %p153 = scmp.ne.s32.totalorder %s145, %s147
      %p154 = scmp.eq.s32.totalorder %s32, 1
      %p155 = por %p153, %p154
      %p156 = scmp.ne.s32.totalorder %s147, %s148
      %p157 = scmp.eq.s32.totalorder %s32, 0
      %p158 = por %p156, %p157
      %p159 = scmp.ne.s32.totalorder %s147, %s148
      %p160 = scmp.eq.s32.totalorder %s33, 1
      %p161 = por %p159, %p160
      %p163 = scmp.ne.s32.totalorder %s148, %s162
      %p164 = scmp.eq.s32.totalorder %s33, 0
      %p165 = por %p163, %p164
      %s166 = ssub.s32 %s27, %s34
      %p167 = scmp.eq.s32.totalorder %s166, 0
      %s169 = sadd.s32 %s168, 1
      %s170 = scalar_select %p167, %s168, %s169
      %p173 = pneg %p167
      %p174 = scmp.eq.s32.totalorder %s27, 1
      %p175 = por %p173, %p174
      %p176 = scmp.ne.s32.totalorder %s168, %s171
      %p177 = scmp.eq.s32.totalorder %s27, 0
      %p178 = por %p176, %p177
      %p179 = scmp.ne.s32.totalorder %s168, %s171
      %p180 = scmp.eq.s32.totalorder %s32, 1
      %p181 = por %p179, %p180
      %p182 = scmp.ne.s32.totalorder %s171, %s172
      %p183 = scmp.eq.s32.totalorder %s32, 0
      %p184 = por %p182, %p183
      %p185 = scmp.ne.s32.totalorder %s171, %s172
      %p186 = scmp.eq.s32.totalorder %s33, 1
      %p187 = por %p185, %p186
      %p189 = scmp.ne.s32.totalorder %s172, %s188
      %p190 = scmp.eq.s32.totalorder %s33, 0
      %p191 = por %p189, %p190
      %s192 = ssub.s32 %s27, %s34
      %p193 = scmp.eq.s32.totalorder %s192, 0
      %s195 = sadd.s32 %s194, 1
      %s196 = scalar_select %p193, %s194, %s195
      %p199 = pneg %p193
      %p200 = scmp.eq.s32.totalorder %s27, 1
      %p201 = por %p199, %p200
      %p202 = scmp.ne.s32.totalorder %s194, %s197
      %p203 = scmp.eq.s32.totalorder %s27, 0
      %p204 = por %p202, %p203
      %p205 = scmp.ne.s32.totalorder %s194, %s197
      %p206 = scmp.eq.s32.totalorder %s32, 1
      %p207 = por %p205, %p206
      %p208 = scmp.ne.s32.totalorder %s197, %s198
      %p209 = scmp.eq.s32.totalorder %s32, 0
      %p210 = por %p208, %p209
      %p211 = scmp.ne.s32.totalorder %s197, %s198
      %p212 = scmp.eq.s32.totalorder %s33, 1
      %p213 = por %p211, %p212
      %p215 = scmp.ne.s32.totalorder %s198, %s214
      %p216 = scmp.eq.s32.totalorder %s33, 0
      %p217 = por %p215, %p216
      %s218 = ssub.s32 %s27, %s34
      %p219 = scmp.eq.s32.totalorder %s218, 0
      %s221 = sadd.s32 %s220, 1
      %s222 = scalar_select %p219, %s220, %s221
      %p225 = pneg %p219
      %p226 = scmp.eq.s32.totalorder %s27, 1
      %p227 = por %p225, %p226
      %p228 = scmp.ne.s32.totalorder %s220, %s223
      %p229 = scmp.eq.s32.totalorder %s27, 0
      %p230 = por %p228, %p229
      %p231 = scmp.ne.s32.totalorder %s220, %s223
      %p232 = scmp.eq.s32.totalorder %s32, 1
      %p233 = por %p231, %p232
      %p234 = scmp.ne.s32.totalorder %s223, %s224
      %p235 = scmp.eq.s32.totalorder %s32, 0
      %p236 = por %p234, %p235
      %p237 = scmp.ne.s32.totalorder %s223, %s224
      %p238 = scmp.eq.s32.totalorder %s33, 1
      %p239 = por %p237, %p238
      %p241 = scmp.ne.s32.totalorder %s224, %s240
      %p242 = scmp.eq.s32.totalorder %s33, 0
      %p243 = por %p241, %p242
      %s244 = ssub.s32 %s27, %s34
      %p245 = scmp.eq.s32.totalorder %s244, 0
      %s247 = sadd.s32 %s246, 1
      %s248 = scalar_select %p245, %s246, %s247
      %p251 = pneg %p245
      %p252 = scmp.eq.s32.totalorder %s27, 1
      %p253 = por %p251, %p252
      %p254 = scmp.ne.s32.totalorder %s246, %s249
      %p255 = scmp.eq.s32.totalorder %s27, 0
      %p256 = por %p254, %p255
      %p257 = scmp.ne.s32.totalorder %s246, %s249
      %p258 = scmp.eq.s32.totalorder %s32, 1
      %p259 = por %p257, %p258
      %p260 = scmp.ne.s32.totalorder %s249, %s250
      %p261 = scmp.eq.s32.totalorder %s32, 0
      %p262 = por %p260, %p261
      %p263 = scmp.ne.s32.totalorder %s249, %s250
      %p264 = scmp.eq.s32.totalorder %s33, 1
      %p265 = por %p263, %p264
      %p267 = scmp.ne.s32.totalorder %s250, %s266
      %p268 = scmp.eq.s32.totalorder %s33, 0
      %p269 = por %p267, %p268
      %p270 = scmp.le.s32.totalorder 1, %s27
      %p271 = scmp.lt.s32.totalorder %s27, 3
      %p272 = pnand %p270, %p271
      %p273 = pneg %p272
      // Predicated region
      $region9: #{tpu_custom_call.1} parent=5 // pred_check
        _
      $region10: #{tpu_custom_call.1} parent=5 // pred_check_branch
        %275 = sbr.rel (%p272) target = $region12
      $region11: #{tpu_custom_call.1} parent=5 // pred_region
        %s276 = ssub.s32 %s27, 1
        // Predicated region
        $region13: #{tpu_custom_call.1} parent=11 // pred_check
          %p277 = pneg %p74
        $region14: #{tpu_custom_call.1} parent=11 // pred_check_branch
          %279 = sbr.rel (%p277) target = $region16
        $region15: #{tpu_custom_call.1} parent=11 // pred_region
          %s281 = ssub.s32 2048, 2048
          %282 = vsyncadd [#allocation6], %s281
          %s283 = sshll.u32 [#allocation5], 4
          %s284 = int_to_ptr.vmem [resolvable:$true] %s283
          %289 = dma.hbm_to_vmem [thread:$0]  %s1, 2048, %s284, [#allocation6], 128, 128, 8
        $region16: #{tpu_custom_call.1} parent=11 // pred_fallthru
          _
        // Predicated region
        $region17: #{tpu_custom_call.1} parent=11 // pred_check
          %p290 = pneg %p95
        $region18: #{tpu_custom_call.1} parent=11 // pred_check_branch
          %292 = sbr.rel (%p290) target = $region20
        $region19: #{tpu_custom_call.1} parent=11 // pred_region
          _
        $region20: #{tpu_custom_call.1} parent=11 // pred_fallthru
          _
        // Predicated region
        $region21: #{tpu_custom_call.1} parent=11 // pred_check
          %p293 = pneg %p116
        $region22: #{tpu_custom_call.1} parent=11 // pred_check_branch
          %295 = sbr.rel (%p293) target = $region24
        $region23: #{tpu_custom_call.1} parent=11 // pred_region
          _
        $region24: #{tpu_custom_call.1} parent=11 // pred_fallthru
          _
        // Predicated region
        $region25: #{tpu_custom_call.1} parent=11 // pred_check
          %p296 = pneg %p137
        $region26: #{tpu_custom_call.1} parent=11 // pred_check_branch
          %298 = sbr.rel (%p296) target = $region28
        $region27: #{tpu_custom_call.1} parent=11 // pred_region
          %s300 = ssub.s32 2048, 2048
          %301 = vsyncadd [#allocation6], %s300
          %s302 = sshll.u32 [#allocation7], 4
          %s303 = int_to_ptr.vmem [resolvable:$true] %s302
          %308 = dma.hbm_to_vmem [thread:$0]  %s4, 2048, %s303, [#allocation6], 128, 128, 8
        $region28: #{tpu_custom_call.1} parent=11 // pred_fallthru
          _
        // Predicated region
        $region29: #{tpu_custom_call.1} parent=11 // pred_check
          %p309 = pneg %p158
        $region30: #{tpu_custom_call.1} parent=11 // pred_check_branch
          %311 = sbr.rel (%p309) target = $region32
        $region31: #{tpu_custom_call.1} parent=11 // pred_region
          %s313 = ssub.s32 2048, 2048
          %314 = vsyncadd [#allocation9], %s313
          %s315 = sshll.u32 [#allocation8], 4
          %s316 = int_to_ptr.vmem [resolvable:$true] %s315
          %321 = dma.hbm_to_vmem [thread:$0]  %s5, 2048, %s316, [#allocation9], 128, 128, 8
        $region32: #{tpu_custom_call.1} parent=11 // pred_fallthru
          _
      $region12: #{tpu_custom_call.1} parent=5 // pred_fallthru
        _
      %p322 = scmp.lt.s32.totalorder %s27, 2
      // Predicated region
      $region33: #{tpu_custom_call.1} parent=5 // pred_check
        %p323 = pneg %p322
      $region34: #{tpu_custom_call.1} parent=5 // pred_check_branch
        %325 = sbr.rel (%p323) target = $region36
      $region35: #{tpu_custom_call.1} parent=5 // pred_region
        // Predicated region
        $region37: #{tpu_custom_call.1} parent=35 // pred_check
          %p326 = pneg %p47
        $region38: #{tpu_custom_call.1} parent=35 // pred_check_branch
          %328 = sbr.rel (%p326) target = $region40
        $region39: #{tpu_custom_call.1} parent=35 // pred_region
          %s329 = sand.u32 %s37, 1
          %s330 = scalar_lea.sflag [#allocation3], %s329
          %s331 = sand.u32 %s37, 1
          %s332 = smul.addr %s331, 8
          %s333 = scalar_lea.vmem [#allocation2], %s332
          %s335 = ssub.s32 128, 128
          %336 = vsyncadd %s330, %s335
          %s337 = smul.addr %s27, 128
          %s338 = scalar_lea.hbm %s0, %s337
          %s340 = sshll.u32 %s333, 4
          %s341 = int_to_ptr.vmem [resolvable:$true] %s340
          %343 = dma.hbm_to_vmem [thread:$0]  %s338, 128, %s341, %s330
        $region40: #{tpu_custom_call.1} parent=35 // pred_fallthru
          _
      $region36: #{tpu_custom_call.1} parent=5 // pred_fallthru
        _
      %p344 = scmp.le.s32.totalorder 1, %s27
      %p345 = scmp.lt.s32.totalorder %s27, 3
      %p346 = pnand %p344, %p345
      %p347 = pneg %p346
      // Predicated region
      $region41: #{tpu_custom_call.1} parent=5 // pred_check
        _
      $region42: #{tpu_custom_call.1} parent=5 // pred_check_branch
        %349 = sbr.rel (%p346) target = $region44
      $region43: #{tpu_custom_call.1} parent=5 // pred_region
        %s350 = ssub.s32 %s27, 1
        %s351 = sand.u32 %s40, 1
        %s352 = scalar_lea.sflag [#allocation3], %s351
        %s353 = sand.u32 %s40, 1
        %s354 = smul.addr %s353, 8
        %s355 = scalar_lea.vmem [#allocation2], %s354
        // Predicated region
        $region45: #{tpu_custom_call.1} parent=43 // pred_check
          %p356 = pneg %p53
        $region46: #{tpu_custom_call.1} parent=43 // pred_check_branch
          %358 = sbr.rel (%p356) target = $region48
        $region47: #{tpu_custom_call.1} parent=43 // pred_region
          %359 = dma.done %s352, 128
        $region48: #{tpu_custom_call.1} parent=43 // pred_fallthru
          _
        // Predicated region
        $region49: #{tpu_custom_call.1} parent=43 // pred_check
          %p360 = pneg %p74
        $region50: #{tpu_custom_call.1} parent=43 // pred_check_branch
          %362 = sbr.rel (%p360) target = $region52
        $region51: #{tpu_custom_call.1} parent=43 // pred_region
          %363 = dma.done [#allocation6], 2048
        $region52: #{tpu_custom_call.1} parent=43 // pred_fallthru
          _
        // Predicated region
        $region53: #{tpu_custom_call.1} parent=43 // pred_check
          %p364 = pneg %p137
        $region54: #{tpu_custom_call.1} parent=43 // pred_check_branch
          %366 = sbr.rel (%p364) target = $region56
        $region55: #{tpu_custom_call.1} parent=43 // pred_region
          %367 = dma.done [#allocation6], 2048
        $region56: #{tpu_custom_call.1} parent=43 // pred_fallthru
          _
        // Predicated region
        $region57: #{tpu_custom_call.1} parent=43 // pred_check
          %p368 = pneg %p158
        $region58: #{tpu_custom_call.1} parent=43 // pred_check_branch
          %370 = sbr.rel (%p368) target = $region60
        $region59: #{tpu_custom_call.1} parent=43 // pred_region
          %371 = dma.done [#allocation9], 2048
        $region60: #{tpu_custom_call.1} parent=43 // pred_fallthru
          _
        %s372 = sand.u32 %s40, 1
        %s373 = scalar_lea.sflag [#allocation3], %s372
        %s374 = sand.u32 %s40, 1
        %s375 = smul.addr %s374, 8
        %s376 = scalar_lea.vmem [#allocation2], %s375
        %p377 = pneg %p53
        %p378 = pneg %p50
        %p379 = pneg %p74
        %p380 = pneg %p71
        %p381 = pneg %p95
        %p382 = pneg %p92
        %p383 = pneg %p116
        %p384 = pneg %p113
        %p385 = pneg %p137
        %p386 = pneg %p134
        %p387 = pneg %p158
        %p388 = pneg %p155
        %p389 = pneg %p184
        %p390 = pneg %p181
        %p391 = scmp.lt.s32.totalorder %s32, 1
        %s392 = scalar_select %p391, %s32, 1
        %s393 = smul.addr %s392, 8
        %s394 = scalar_lea.vmem %s6, %s393
        %p395 = pneg %p210
        %p396 = pneg %p207
        %p397 = scmp.lt.s32.totalorder %s32, 1
        %s398 = scalar_select %p397, %s32, 1
        %s399 = smul.addr %s398, 8
        %s400 = scalar_lea.vmem %s7, %s399
        %p401 = pneg %p236
        %p402 = pneg %p233
        %s403 = sand.u32 %s223, 1
        %s404 = scalar_lea.sflag [#allocation4], %s403
        %s405 = sand.u32 %s223, 1
        %s406 = smul.addr %s405, 4
        %s407 = scalar_lea.vmem [#allocation10], %s406
        %p408 = pneg %p262
        %p409 = pneg %p259
        %s410 = sand.u32 %s249, 1
        %s411 = scalar_lea.sflag [#allocation12], %s410
        %s412 = sand.u32 %s249, 1
        %s413 = smul.addr %s412, 4
        %s414 = scalar_lea.vmem [#allocation11], %s413
        %p415 = scmp.lt.s32.totalorder %s32, 1
        %s416 = scalar_select %p415, %s32, 1
        %s417 = smul.addr %s416, 8
        %s418 = scalar_lea.vmem %s6, %s417
        %p419 = scmp.lt.s32.totalorder %s32, 1
        %s420 = scalar_select %p419, %s32, 1
        %s421 = smul.addr %s420, 8
        %s422 = scalar_lea.vmem %s7, %s421
        %v423 = vld [vmem:[%s355] sm:$0xff]
        %v424 = vld [vmem:[#allocation5] sm:$0xff]
        %v425 = vld [vmem:[#allocation5 + $0x8] sm:$0xff]
        %v426 = vld [vmem:[#allocation5 + $0x10] sm:$0xff]
        %v427 = vld [vmem:[#allocation5 + $0x18] sm:$0xff]
        %v428 = vld [vmem:[#allocation5 + $0x20] sm:$0xff]
        %v429 = vld [vmem:[#allocation5 + $0x28] sm:$0xff]
        %v430 = vld [vmem:[#allocation5 + $0x30] sm:$0xff]
        %v431 = vld [vmem:[#allocation5 + $0x38] sm:$0xff]
        %v432 = vld [vmem:[#allocation5 + $0x40] sm:$0xff]
        %v433 = vld [vmem:[#allocation5 + $0x48] sm:$0xff]
        %v434 = vld [vmem:[#allocation5 + $0x50] sm:$0xff]
        %v435 = vld [vmem:[#allocation5 + $0x58] sm:$0xff]
        %v436 = vld [vmem:[#allocation5 + $0x60] sm:$0xff]
        %v437 = vld [vmem:[#allocation5 + $0x68] sm:$0xff]
        %v438 = vld [vmem:[#allocation5 + $0x70] sm:$0xff]
        %v439 = vld [vmem:[#allocation5 + $0x78] sm:$0xff]
        %440 = vmatprep.subr.mxu0 0.0
        %441 = vmatpush1.msra.mxu0 %v439
        %442 = vmatprep.subr.mxu0 0.0
        %443 = vmatpush1.msra.mxu0 %v438
        %444 = vmatprep.subr.mxu0 0.0
        %445 = vmatpush1.msra.mxu0 %v437
        %446 = vmatprep.subr.mxu0 0.0
        %447 = vmatpush1.msra.mxu0 %v436
        %448 = vmatprep.subr.mxu0 0.0
        %449 = vmatpush1.msra.mxu0 %v435
        %450 = vmatprep.subr.mxu0 0.0
        %451 = vmatpush1.msra.mxu0 %v434
        %452 = vmatprep.subr.mxu0 0.0
        %453 = vmatpush1.msra.mxu0 %v433
        %454 = vmatprep.subr.mxu0 0.0
        %455 = vmatpush1.msra.mxu0 %v432
        %456 = vmatprep.subr.mxu0 0.0
        %457 = vmatpush1.msra.mxu0 %v431
        %458 = vmatprep.subr.mxu0 0.0
        %459 = vmatpush1.msra.mxu0 %v430
        %460 = vmatprep.subr.mxu0 0.0
        %461 = vmatpush1.msra.mxu0 %v429
        %462 = vmatprep.subr.mxu0 0.0
        %463 = vmatpush1.msra.mxu0 %v428
        %464 = vmatprep.subr.mxu0 0.0
        %465 = vmatpush1.msra.mxu0 %v427
        %466 = vmatprep.subr.mxu0 0.0
        %467 = vmatpush1.msra.mxu0 %v426
        %468 = vmatprep.subr.mxu0 0.0
        %469 = vmatpush1.msra.mxu0 %v425
        %470 = vmatprep.subr.mxu0 0.0
        %471 = vmatpush1.msra.mxu0 %v424
        %472 = vmatprep.subr.mxu0 0.0
        %473 = vmatpush2.msra.mxu0 0.0
        %474 = vmatprep.subr.mxu0 0.0
        %475 = vmatpush2.msra.mxu0 0.0
        %476 = vmatprep.subr.mxu0 0.0
        %477 = vmatpush2.msra.mxu0 0.0
        %478 = vmatprep.subr.mxu0 0.0
        %479 = vmatpush2.msra.mxu0 0.0
        %480 = vmatprep.subr.mxu0 0.0
        %481 = vmatpush2.msra.mxu0 0.0
        %482 = vmatprep.subr.mxu0 0.0
        %483 = vmatpush2.msra.mxu0 0.0
        %484 = vmatprep.subr.mxu0 0.0
        %485 = vmatpush2.msra.mxu0 0.0
        %486 = vmatprep.subr.mxu0 0.0
        %487 = vmatpush2.msra.mxu0 0.0
        %488 = vmatprep.subr.mxu0 0.0
        %489 = vmatpush2.msra.mxu0 0.0
        %490 = vmatprep.subr.mxu0 0.0
        %491 = vmatpush2.msra.mxu0 0.0
        %492 = vmatprep.subr.mxu0 0.0
        %493 = vmatpush2.msra.mxu0 0.0
        %494 = vmatprep.subr.mxu0 0.0
        %495 = vmatpush2.msra.mxu0 0.0
        %496 = vmatprep.subr.mxu0 0.0
        %497 = vmatpush2.msra.mxu0 0.0
        %498 = vmatprep.subr.mxu0 0.0
        %499 = vmatpush2.msra.mxu0 0.0
        %500 = vmatprep.subr.mxu0 0.0
        %501 = vmatpush2.msra.mxu0 0.0
        %502 = vmatprep.subr.mxu0 0.0
        %503 = vmatpush2.msra.mxu0 0.0
        %504 = vmatprep.mubr.f32.mxu0 0.0
        %505 = vmatmul.mubr.f32.gmra.mxu0 %v423
        %v506 = vpop.f32.mrf.mxu0
        %v507 = vadd.f32 0.0, %v506
        %v508 = vpop.f32.mrf.mxu0
        %509 = vdwg.mxu0
        %v510 = vld [vmem:[%s2] sm:$0x1]
        %v512 = vlaneseq
        %v513 = vshrl.u32 %v512, 7
        %v514 = vsub.s32 0, %v513
        %v515 = vrot.slane %v510, %v514
        %v517 = vmul.f32 %v507, %v515
        %518 = vadd.xlane.f32.xlu0 %v517
        %v519 = vpop.xlane.xlu0 %518
        %vm520 = vcmask 7168
        %521 = vst.msk [vmem:[%s418] sm:$0xff] %vm520, %v519
        %v522 = vld [vmem:[%s3] sm:$0x1]
        %v524 = vlaneseq
        %v525 = vshrl.u32 %v524, 7
        %v526 = vsub.s32 0, %v525
        %v527 = vrot.slane %v522, %v526
        %v529 = vmul.f32 %v507, %v527
        %530 = vadd.xlane.f32.xlu0 %v529
        %v531 = vpop.xlane.xlu0 %530
        %532 = vst.msk [vmem:[%s422] sm:$0xff] %vm520, %v531
        %v533 = vld [vmem:[#allocation7] sm:$0xff]
        %v534 = vld [vmem:[#allocation7 + $0x8] sm:$0xff]
        %v535 = vld [vmem:[#allocation7 + $0x10] sm:$0xff]
        %v536 = vld [vmem:[#allocation7 + $0x18] sm:$0xff]
        %v537 = vld [vmem:[#allocation7 + $0x20] sm:$0xff]
        %v538 = vld [vmem:[#allocation7 + $0x28] sm:$0xff]
        %v539 = vld [vmem:[#allocation7 + $0x30] sm:$0xff]
        %v540 = vld [vmem:[#allocation7 + $0x38] sm:$0xff]
        %v541 = vld [vmem:[#allocation7 + $0x40] sm:$0xff]
        %v542 = vld [vmem:[#allocation7 + $0x48] sm:$0xff]
        %v543 = vld [vmem:[#allocation7 + $0x50] sm:$0xff]
        %v544 = vld [vmem:[#allocation7 + $0x58] sm:$0xff]
        %v545 = vld [vmem:[#allocation7 + $0x60] sm:$0xff]
        %v546 = vld [vmem:[#allocation7 + $0x68] sm:$0xff]
        %v547 = vld [vmem:[#allocation7 + $0x70] sm:$0xff]
        %v548 = vld [vmem:[#allocation7 + $0x78] sm:$0xff]
        %549 = vmatprep.subr.mxu0 0.0
        %550 = vmatpush1.msra.mxu0 %v548
        %551 = vmatprep.subr.mxu0 0.0
        %552 = vmatpush1.msra.mxu0 %v547
        %553 = vmatprep.subr.mxu0 0.0
        %554 = vmatpush1.msra.mxu0 %v546
        %555 = vmatprep.subr.mxu0 0.0
        %556 = vmatpush1.msra.mxu0 %v545
        %557 = vmatprep.subr.mxu0 0.0
        %558 = vmatpush1.msra.mxu0 %v544
        %559 = vmatprep.subr.mxu0 0.0
        %560 = vmatpush1.msra.mxu0 %v543
        %561 = vmatprep.subr.mxu0 0.0
        %562 = vmatpush1.msra.mxu0 %v542
        %563 = vmatprep.subr.mxu0 0.0
        %564 = vmatpush1.msra.mxu0 %v541
        %565 = vmatprep.subr.mxu0 0.0
        %566 = vmatpush1.msra.mxu0 %v540
        %567 = vmatprep.subr.mxu0 0.0
        %568 = vmatpush1.msra.mxu0 %v539
        %569 = vmatprep.subr.mxu0 0.0
        %570 = vmatpush1.msra.mxu0 %v538
        %571 = vmatprep.subr.mxu0 0.0
        %572 = vmatpush1.msra.mxu0 %v537
        %573 = vmatprep.subr.mxu0 0.0
        %574 = vmatpush1.msra.mxu0 %v536
        %575 = vmatprep.subr.mxu0 0.0
        %576 = vmatpush1.msra.mxu0 %v535
        %577 = vmatprep.subr.mxu0 0.0
        %578 = vmatpush1.msra.mxu0 %v534
        %579 = vmatprep.subr.mxu0 0.0
        %580 = vmatpush1.msra.mxu0 %v533
        %581 = vmatprep.subr.mxu0 0.0
        %582 = vmatpush2.msra.mxu0 0.0
        %583 = vmatprep.subr.mxu0 0.0
        %584 = vmatpush2.msra.mxu0 0.0
        %585 = vmatprep.subr.mxu0 0.0
        %586 = vmatpush2.msra.mxu0 0.0
        %587 = vmatprep.subr.mxu0 0.0
        %588 = vmatpush2.msra.mxu0 0.0
        %589 = vmatprep.subr.mxu0 0.0
        %590 = vmatpush2.msra.mxu0 0.0
        %591 = vmatprep.subr.mxu0 0.0
        %592 = vmatpush2.msra.mxu0 0.0
        %593 = vmatprep.subr.mxu0 0.0
        %594 = vmatpush2.msra.mxu0 0.0
        %595 = vmatprep.subr.mxu0 0.0
        %596 = vmatpush2.msra.mxu0 0.0
        %597 = vmatprep.subr.mxu0 0.0
        %598 = vmatpush2.msra.mxu0 0.0
        %599 = vmatprep.subr.mxu0 0.0
        %600 = vmatpush2.msra.mxu0 0.0
        %601 = vmatprep.subr.mxu0 0.0
        %602 = vmatpush2.msra.mxu0 0.0
        %603 = vmatprep.subr.mxu0 0.0
        %604 = vmatpush2.msra.mxu0 0.0
        %605 = vmatprep.subr.mxu0 0.0
        %606 = vmatpush2.msra.mxu0 0.0
        %607 = vmatprep.subr.mxu0 0.0
        %608 = vmatpush2.msra.mxu0 0.0
        %609 = vmatprep.subr.mxu0 0.0
        %610 = vmatpush2.msra.mxu0 0.0
        %611 = vmatprep.subr.mxu0 0.0
        %612 = vmatpush2.msra.mxu0 0.0
        %613 = vmatprep.mubr.f32.mxu0 0.0
        %614 = vmatmul.mubr.f32.gmra.mxu0 %v423
        %v615 = vpop.f32.mrf.mxu0
        %v616 = vadd.f32 0.0, %v615
        %v617 = vpop.f32.mrf.mxu0
        %618 = vdwg.mxu0
        %v619 = vpack.c.bf16 %v616, %v616
        %620 = vst [vmem:[%s407] sm:$0xf] %v619
        %v621 = vld [vmem:[#allocation8] sm:$0xff]
        %v622 = vld [vmem:[#allocation8 + $0x8] sm:$0xff]
        %v623 = vld [vmem:[#allocation8 + $0x10] sm:$0xff]
        %v624 = vld [vmem:[#allocation8 + $0x18] sm:$0xff]
        %v625 = vld [vmem:[#allocation8 + $0x20] sm:$0xff]
        %v626 = vld [vmem:[#allocation8 + $0x28] sm:$0xff]
        %v627 = vld [vmem:[#allocation8 + $0x30] sm:$0xff]
        %v628 = vld [vmem:[#allocation8 + $0x38] sm:$0xff]
        %v629 = vld [vmem:[#allocation8 + $0x40] sm:$0xff]
        %v630 = vld [vmem:[#allocation8 + $0x48] sm:$0xff]
        %v631 = vld [vmem:[#allocation8 + $0x50] sm:$0xff]
        %v632 = vld [vmem:[#allocation8 + $0x58] sm:$0xff]
        %v633 = vld [vmem:[#allocation8 + $0x60] sm:$0xff]
        %v634 = vld [vmem:[#allocation8 + $0x68] sm:$0xff]
        %v635 = vld [vmem:[#allocation8 + $0x70] sm:$0xff]
        %v636 = vld [vmem:[#allocation8 + $0x78] sm:$0xff]
        %637 = vmatprep.subr.mxu0 0.0
        %638 = vmatpush1.msra.mxu0 %v636
        %639 = vmatprep.subr.mxu0 0.0
        %640 = vmatpush1.msra.mxu0 %v635
        %641 = vmatprep.subr.mxu0 0.0
        %642 = vmatpush1.msra.mxu0 %v634
        %643 = vmatprep.subr.mxu0 0.0
        %644 = vmatpush1.msra.mxu0 %v633
        %645 = vmatprep.subr.mxu0 0.0
        %646 = vmatpush1.msra.mxu0 %v632
        %647 = vmatprep.subr.mxu0 0.0
        %648 = vmatpush1.msra.mxu0 %v631
        %649 = vmatprep.subr.mxu0 0.0
        %650 = vmatpush1.msra.mxu0 %v630
        %651 = vmatprep.subr.mxu0 0.0
        %652 = vmatpush1.msra.mxu0 %v629
        %653 = vmatprep.subr.mxu0 0.0
        %654 = vmatpush1.msra.mxu0 %v628
        %655 = vmatprep.subr.mxu0 0.0
        %656 = vmatpush1.msra.mxu0 %v627
        %657 = vmatprep.subr.mxu0 0.0
        %658 = vmatpush1.msra.mxu0 %v626
        %659 = vmatprep.subr.mxu0 0.0
        %660 = vmatpush1.msra.mxu0 %v625
        %661 = vmatprep.subr.mxu0 0.0
        %662 = vmatpush1.msra.mxu0 %v624
        %663 = vmatprep.subr.mxu0 0.0
        %664 = vmatpush1.msra.mxu0 %v623
        %665 = vmatprep.subr.mxu0 0.0
        %666 = vmatpush1.msra.mxu0 %v622
        %667 = vmatprep.subr.mxu0 0.0
        %668 = vmatpush1.msra.mxu0 %v621
        %669 = vmatprep.subr.mxu0 0.0
        %670 = vmatpush2.msra.mxu0 0.0
        %671 = vmatprep.subr.mxu0 0.0
        %672 = vmatpush2.msra.mxu0 0.0
        %673 = vmatprep.subr.mxu0 0.0
        %674 = vmatpush2.msra.mxu0 0.0
        %675 = vmatprep.subr.mxu0 0.0
        %676 = vmatpush2.msra.mxu0 0.0
        %677 = vmatprep.subr.mxu0 0.0
        %678 = vmatpush2.msra.mxu0 0.0
        %679 = vmatprep.subr.mxu0 0.0
        %680 = vmatpush2.msra.mxu0 0.0
        %681 = vmatprep.subr.mxu0 0.0
        %682 = vmatpush2.msra.mxu0 0.0
        %683 = vmatprep.subr.mxu0 0.0
        %684 = vmatpush2.msra.mxu0 0.0
        %685 = vmatprep.subr.mxu0 0.0
        %686 = vmatpush2.msra.mxu0 0.0
        %687 = vmatprep.subr.mxu0 0.0
        %688 = vmatpush2.msra.mxu0 0.0
        %689 = vmatprep.subr.mxu0 0.0
        %690 = vmatpush2.msra.mxu0 0.0
        %691 = vmatprep.subr.mxu0 0.0
        %692 = vmatpush2.msra.mxu0 0.0
        %693 = vmatprep.subr.mxu0 0.0
        %694 = vmatpush2.msra.mxu0 0.0
        %695 = vmatprep.subr.mxu0 0.0
        %696 = vmatpush2.msra.mxu0 0.0
        %697 = vmatprep.subr.mxu0 0.0
        %698 = vmatpush2.msra.mxu0 0.0
        %699 = vmatprep.subr.mxu0 0.0
        %700 = vmatpush2.msra.mxu0 0.0
        %701 = vmatprep.mubr.f32.mxu0 0.0
        %702 = vmatmul.mubr.f32.gmra.mxu0 %v423
        %v703 = vpop.f32.mrf.mxu0
        %v704 = vadd.f32 0.0, %v703
        %v705 = vpop.f32.mrf.mxu0
        %706 = vdwg.mxu0
        %v707 = vsub.f32 0.0, %v704
        %v708 = vpack.c.bf16 %v707, %v707
        %709 = vst [vmem:[%s414] sm:$0xf] %v708
        %p710 = scmp.lt.s32.totalorder %s32, 1
        %s711 = scalar_select %p710, %s32, 1
        %s712 = smul.addr %s711, 8
        %s713 = scalar_lea.vmem %s6, %s712
        %p714 = scmp.lt.s32.totalorder %s32, 1
        %s715 = scalar_select %p714, %s32, 1
        %s716 = smul.addr %s715, 8
        %s717 = scalar_lea.vmem %s7, %s716
        %s718 = sand.u32 %s223, 1
        %s719 = scalar_lea.sflag [#allocation4], %s718
        %s720 = sand.u32 %s223, 1
        %s721 = smul.addr %s720, 4
        %s722 = scalar_lea.vmem [#allocation10], %s721
        %s723 = sand.u32 %s249, 1
        %s724 = scalar_lea.sflag [#allocation12], %s723
        %s725 = sand.u32 %s249, 1
        %s726 = smul.addr %s725, 4
        %s727 = scalar_lea.vmem [#allocation11], %s726
        // Predicated region
        $region61: #{tpu_custom_call.1} parent=43 // pred_check
          %p728 = pneg %p181
        $region62: #{tpu_custom_call.1} parent=43 // pred_check_branch
          %730 = sbr.rel (%p728) target = $region64
        $region63: #{tpu_custom_call.1} parent=43 // pred_region
          _
        $region64: #{tpu_custom_call.1} parent=43 // pred_fallthru
          _
        // Predicated region
        $region65: #{tpu_custom_call.1} parent=43 // pred_check
          %p731 = pneg %p207
        $region66: #{tpu_custom_call.1} parent=43 // pred_check_branch
          %733 = sbr.rel (%p731) target = $region68
        $region67: #{tpu_custom_call.1} parent=43 // pred_region
          _
        $region68: #{tpu_custom_call.1} parent=43 // pred_fallthru
          _
        // Predicated region
        $region69: #{tpu_custom_call.1} parent=43 // pred_check
          %p734 = pneg %p233
        $region70: #{tpu_custom_call.1} parent=43 // pred_check_branch
          %736 = sbr.rel (%p734) target = $region72
        $region71: #{tpu_custom_call.1} parent=43 // pred_region
          %s738 = ssub.s32 64, 64
          %739 = vsyncadd %s719, %s738
          %s740 = smul.addr %s32, 64
          %s741 = scalar_lea.hbm %s8, %s740
          %s743 = sshll.u32 %s722, 4
          %s744 = int_to_ptr.vmem [resolvable:$true] %s743
          %746 = dma.vmem_to_hbm [thread:$0]  %s744, 64, %s741, %s719
        $region72: #{tpu_custom_call.1} parent=43 // pred_fallthru
          _
        // Predicated region
        $region73: #{tpu_custom_call.1} parent=43 // pred_check
          %p747 = pneg %p259
        $region74: #{tpu_custom_call.1} parent=43 // pred_check_branch
          %749 = sbr.rel (%p747) target = $region76
        $region75: #{tpu_custom_call.1} parent=43 // pred_region
          %s751 = ssub.s32 64, 64
          %752 = vsyncadd %s724, %s751
          %s753 = smul.addr %s32, 64
          %s754 = scalar_lea.hbm %s9, %s753
          %s756 = sshll.u32 %s727, 4
          %s757 = int_to_ptr.vmem [resolvable:$true] %s756
          %759 = dma.vmem_to_hbm [thread:$0]  %s757, 64, %s754, %s724
        $region76: #{tpu_custom_call.1} parent=43 // pred_fallthru
          _
      $region44: #{tpu_custom_call.1} parent=5 // pred_fallthru
        _
      %p760 = scmp.le.s32.totalorder 2, %s27
      // Predicated region
      $region77: #{tpu_custom_call.1} parent=5 // pred_check
        %p761 = pneg %p760
      $region78: #{tpu_custom_call.1} parent=5 // pred_check_branch
        %763 = sbr.rel (%p761) target = $region80
      $region79: #{tpu_custom_call.1} parent=5 // pred_region
        %s764 = ssub.s32 %s27, 2
        // Predicated region
        $region81: #{tpu_custom_call.1} parent=79 // pred_check
          %p765 = pneg %p187
        $region82: #{tpu_custom_call.1} parent=79 // pred_check_branch
          %767 = sbr.rel (%p765) target = $region84
        $region83: #{tpu_custom_call.1} parent=79 // pred_region
          %p768 = scmp.lt.s32.totalorder %s33, 1
          %s769 = scalar_select %p768, %s33, 1
          %s770 = smul.addr %s769, 8
          %s771 = scalar_lea.vmem %s6, %s770
        $region84: #{tpu_custom_call.1} parent=79 // pred_fallthru
          _
        // Predicated region
        $region85: #{tpu_custom_call.1} parent=79 // pred_check
          %p772 = pneg %p213
        $region86: #{tpu_custom_call.1} parent=79 // pred_check_branch
          %774 = sbr.rel (%p772) target = $region88
        $region87: #{tpu_custom_call.1} parent=79 // pred_region
          %p775 = scmp.lt.s32.totalorder %s33, 1
          %s776 = scalar_select %p775, %s33, 1
          %s777 = smul.addr %s776, 8
          %s778 = scalar_lea.vmem %s7, %s777
        $region88: #{tpu_custom_call.1} parent=79 // pred_fallthru
          _
        // Predicated region
        $region89: #{tpu_custom_call.1} parent=79 // pred_check
          %p779 = pneg %p239
        $region90: #{tpu_custom_call.1} parent=79 // pred_check_branch
          %781 = sbr.rel (%p779) target = $region92
        $region91: #{tpu_custom_call.1} parent=79 // pred_region
          %s782 = sand.u32 %s224, 1
          %s783 = scalar_lea.sflag [#allocation4], %s782
          %s784 = sand.u32 %s224, 1
          %s785 = smul.addr %s784, 4
          %s786 = scalar_lea.vmem [#allocation10], %s785
          %787 = dma.done %s783, 64
        $region92: #{tpu_custom_call.1} parent=79 // pred_fallthru
          _
        // Predicated region
        $region93: #{tpu_custom_call.1} parent=79 // pred_check
          %p788 = pneg %p265
        $region94: #{tpu_custom_call.1} parent=79 // pred_check_branch
          %790 = sbr.rel (%p788) target = $region96
        $region95: #{tpu_custom_call.1} parent=79 // pred_region
          %s791 = sand.u32 %s250, 1
          %s792 = scalar_lea.sflag [#allocation12], %s791
          %s793 = sand.u32 %s250, 1
          %s794 = smul.addr %s793, 4
          %s795 = scalar_lea.vmem [#allocation11], %s794
          %796 = dma.done %s792, 64
        $region96: #{tpu_custom_call.1} parent=79 // pred_fallthru
          _
      $region80: #{tpu_custom_call.1} parent=5 // pred_fallthru
        _
    $region6: #{tpu_custom_call.1} parent=1 // loop_footer
      %s31 = sadd.s32 1, %s27
    $region7: #{tpu_custom_call.1} parent=1 // loop_footer_branch
      %26 = sbr.rel target = $region3
    $region8: #{tpu_custom_call.1} parent=1 // loop_exit
      _
    %797 = vsyncpa [#allocation3], 1
    %s798 = scalar_lea.sflag [#allocation3], 1
    %799 = vsyncpa %s798, 1
    %800 = vsyncpa [#allocation6], 1
    %801 = vsyncpa [#allocation9], 1
    %802 = vsyncpa [#allocation4], 1
    %s803 = scalar_lea.sflag [#allocation4], 1
    %804 = vsyncpa %s803, 1
    %805 = vsyncpa [#allocation12], 1
    %s806 = scalar_lea.sflag [#allocation12], 1
    %807 = vsyncpa %s806, 1

</llo_original>
